<compile_context>
chip_gen: v7x
topology: tpu7x:2x2x1
jax: 0.10.0
libtpu: 0.0.40
codegen_flags: <defaults>
</compile_context>

<pallas_src>
import functools

import jax
import jax.numpy as jnp
from jax import lax
from jax.experimental import pallas as pl
from jax.experimental.pallas import tpu as pltpu


def _self_output_kernel(x_ref, res_ref, w_ref, p_ref, o_ref, *, eps):
    # x_ref:   (tm, H)  block of hidden_states rows (native dtype)
    # res_ref: (tm, H)  block of input_tensor (residual) rows
    # w_ref:   (H, H)   pre-transposed weight, [in, out] layout, same dtype as x
    # p_ref:   (3, H)   row 0 = dense bias, row 1 = LN gamma, row 2 = LN beta (f32)
    # o_ref:   (tm, H)

    # dense: x @ W^T (weight already transposed in the wrapper).  Native-dtype
    # operands, f32 accumulation on the MXU.
    h = jnp.dot(x_ref[...], w_ref[...], preferred_element_type=jnp.float32)

    bias = p_ref[0:1, :]     # (1, H) f32
    gamma = p_ref[1:2, :]    # (1, H) f32
    beta = p_ref[2:3, :]     # (1, H) f32

    # dropout: identity (eval); residual add; LayerNorm in f32, two-pass stats.
    y = h + bias + res_ref[...].astype(jnp.float32)

    inv_h = jnp.float32(1.0 / y.shape[-1])
    mean = jnp.sum(y, axis=-1, keepdims=True) * inv_h
    yc = y - mean
    var = jnp.sum(yc * yc, axis=-1, keepdims=True) * inv_h
    inv_std = lax.rsqrt(var + jnp.float32(eps))

    o_ref[...] = (yc * (inv_std * gamma) + beta).astype(o_ref.dtype)


def _pick_row_tile(rows, requested):
    """Pick a row tile: multiple of 8, <= requested, and such that the grid has
    at least 2 steps whenever possible (keeps both v7x TensorCores busy)."""
    if rows <= 8:
        return rows                      # block equals full dim -> always legal
    half = (((rows + 1) // 2) + 7) // 8 * 8
    return max(8, min(requested, half))


def layoutlmv3_self_output(hidden_states, input_tensor, weight, bias, ln_weight, ln_bias,
                           *, eps=1e-5, row_tile=512):
    """hidden_states, input_tensor: [B, S, H]; weight: [H, H] (PyTorch layout, out x in)."""
    B, S, H = hidden_states.shape
    rows = B * S
    dtype = hidden_states.dtype

    x2 = hidden_states.reshape(rows, H)
    r2 = input_tensor.reshape(rows, H)

    # One-time HBM transpose + cast: kernel contracts (1,0), both MXU operands
    # share the activation dtype (keeps bf16 models on the bf16 MXU path).
    w_t = jnp.asarray(weight).T.astype(dtype)

    # Fold the three per-feature vectors into one resident (3, H) f32 operand.
    params = jnp.stack(
        [jnp.asarray(bias, dtype=jnp.float32),
         jnp.asarray(ln_weight, dtype=jnp.float32),
         jnp.asarray(ln_bias, dtype=jnp.float32)],
        axis=0,
    )

    tm = _pick_row_tile(rows, row_tile)
    grid = (pl.cdiv(rows, tm),)          # ragged: partial last block handled by Pallas

    in_itemsize = int(jnp.dtype(dtype).itemsize)
    cost = pl.CostEstimate(
        flops=2 * rows * H * H,
        transcendentals=rows,            # one rsqrt per row
        bytes_accessed=(3 * rows * H + H * H) * in_itemsize + 3 * H * 4,
    )

    kernel = functools.partial(_self_output_kernel, eps=eps)

    out = pl.pallas_call(
        kernel,
        out_shape=jax.ShapeDtypeStruct((rows, H), dtype),
        grid_spec=pltpu.PrefetchScalarGridSpec(
            num_scalar_prefetch=0,
            grid=grid,
            in_specs=[
                pl.BlockSpec((tm, H), lambda i: (i, 0)),    # hidden_states rows
                pl.BlockSpec((tm, H), lambda i: (i, 0)),    # residual rows
                pl.BlockSpec((H, H), lambda i: (0, 0),      # weight: grid-invariant,
                             pipeline_mode=pl.Buffered(1)),  #   single-buffered
                pl.BlockSpec((3, H), lambda i: (0, 0),      # bias / gamma / beta
                             pipeline_mode=pl.Buffered(1)),
            ],
            out_specs=pl.BlockSpec((tm, H), lambda i: (i, 0)),
        ),
        compiler_params=pltpu.CompilerParams(
            dimension_semantics=("parallel",),
            vmem_limit_bytes=64 * 1024 * 1024,
        ),
        cost_estimate=cost,
    )(x2, r2, w_t, params)

    return out.reshape(B, S, H)


def _reference(hidden_states, input_tensor, weight, bias, ln_weight, ln_bias, eps=1e-5):
    h = jnp.einsum("bsh,oh->bso", hidden_states, weight) + bias
    y = h + input_tensor
    mean = jnp.mean(y, axis=-1, keepdims=True)
    var = jnp.mean((y - mean) ** 2, axis=-1, keepdims=True)
    return (y - mean) / jnp.sqrt(var + eps) * ln_weight + ln_bias


if __name__ == "__main__":
    # Small config: batch=2, seq=8, hidden=32 (layer_norm_eps=1e-5)
    B, S, H = 2, 8, 32
    eps = 1e-5

    key = jax.random.PRNGKey(0)
    k1, k2, k3, k4 = jax.random.split(key, 4)

    hidden_states = jax.random.normal(k1, (B, S, H), dtype=jnp.float32)
    input_tensor = jax.random.normal(k2, (B, S, H), dtype=jnp.float32)

    # Deterministic parameter init (nn.Linear-like scale), nn.LayerNorm defaults.
    weight = jax.random.normal(k3, (H, H), dtype=jnp.float32) * (1.0 / jnp.sqrt(H))
    bias = jax.random.normal(k4, (H,), dtype=jnp.float32) * 0.01
    ln_weight = jnp.ones((H,), dtype=jnp.float32)
    ln_bias = jnp.zeros((H,), dtype=jnp.float32)

    out = layoutlmv3_self_output(hidden_states, input_tensor, weight, bias,
                                 ln_weight, ln_bias, eps=eps)
    out = jax.block_until_ready(out)

    ref = _reference(hidden_states, input_tensor, weight, bias, ln_weight, ln_bias, eps=eps)
    assert out.shape == (B, S, H)
    assert jnp.allclose(out, ref, atol=1e-4, rtol=1e-4), "mismatch vs reference"

    print("KERNEL_OK")
</pallas_src>

<mosaic_0001>
module attributes {stable_mosaic.version = 11 : i64} {
  func.func @_self_output_kernel(%arg0: i32, %arg1: memref<8x32xf32, #tpu.memory_space<vmem>>, %arg2: memref<8x32xf32, #tpu.memory_space<vmem>>, %arg3: memref<32x32xf32, #tpu.memory_space<vmem>>, %arg4: memref<3x32xf32, #tpu.memory_space<vmem>>, %arg5: memref<8x32xf32, #tpu.memory_space<vmem>>) attributes {dimension_semantics = [#tpu.dimension_semantics<parallel>], iteration_bounds = array<i64: 2>, scalar_prefetch = 0 : i64, scratch_operands = 0 : i64, tpu.core_type = #tpu.core_type<tc>, window_params = [{transform_indices = @transform_0, window_bounds = array<i64: 8, 32>}, {transform_indices = @transform_1, window_bounds = array<i64: 8, 32>}, {pipeline_mode = #tpu.pipeline_mode<synchronous>, transform_indices = @transform_2, window_bounds = array<i64: 32, 32>}, {pipeline_mode = #tpu.pipeline_mode<synchronous>, transform_indices = @transform_3, window_bounds = array<i64: 3, 32>}, {transform_indices = @transform_4, window_bounds = array<i64: 8, 32>}]} {
    %c0 = arith.constant 0 : index
    %c0_0 = arith.constant 0 : index
    %0 = vector.load %arg1[%c0, %c0_0] : memref<8x32xf32, #tpu.memory_space<vmem>>, vector<8x32xf32>
    %c0_1 = arith.constant 0 : index
    %c0_2 = arith.constant 0 : index
    %1 = vector.load %arg3[%c0_1, %c0_2] : memref<32x32xf32, #tpu.memory_space<vmem>>, vector<32x32xf32>
    %cst = arith.constant dense<0.000000e+00> : vector<8x32xf32>
    %2 = tpu.matmul %0, %1, %cst {dimension_numbers = #tpu.dot_dimension_numbers<[1], [0], [0], [1], [0, 0, 1, 1], [], []>} : vector<8x32xf32>, vector<32x32xf32>, vector<8x32xf32> -> vector<8x32xf32>
    %c0_3 = arith.constant 0 : index
    %c0_4 = arith.constant 0 : index
    %3 = vector.load %arg4[%c0_3, %c0_4] : memref<3x32xf32, #tpu.memory_space<vmem>>, vector<1x32xf32>
    %c1 = arith.constant 1 : index
    %c0_5 = arith.constant 0 : index
    %4 = vector.load %arg4[%c1, %c0_5] : memref<3x32xf32, #tpu.memory_space<vmem>>, vector<1x32xf32>
    %c2 = arith.constant 2 : index
    %c0_6 = arith.constant 0 : index
    %5 = vector.load %arg4[%c2, %c0_6] : memref<3x32xf32, #tpu.memory_space<vmem>>, vector<1x32xf32>
    %6 = vector.broadcast %3 : vector<1x32xf32> to vector<8x32xf32>
    %7 = arith.addf %2, %6 : vector<8x32xf32>
    %c0_7 = arith.constant 0 : index
    %c0_8 = arith.constant 0 : index
    %8 = vector.load %arg2[%c0_7, %c0_8] : memref<8x32xf32, #tpu.memory_space<vmem>>, vector<8x32xf32>
    %9 = arith.addf %7, %8 : vector<8x32xf32>
    %cst_9 = arith.constant dense<0.000000e+00> : vector<8xf32>
    %10 = vector.multi_reduction <add>, %9, %cst_9 [1] : vector<8x32xf32> to vector<8xf32>
    %11 = vector.shape_cast %10 : vector<8xf32> to vector<8x1xf32>
    %cst_10 = arith.constant 3.125000e-02 : f32
    %12 = vector.broadcast %cst_10 : f32 to vector<8x1xf32>
    %13 = arith.mulf %11, %12 : vector<8x1xf32>
    %14 = vector.broadcast %13 : vector<8x1xf32> to vector<8x32xf32>
    %15 = arith.subf %9, %14 : vector<8x32xf32>
    %16 = arith.mulf %15, %15 : vector<8x32xf32>
    %cst_11 = arith.constant dense<0.000000e+00> : vector<8xf32>
    %17 = vector.multi_reduction <add>, %16, %cst_11 [1] : vector<8x32xf32> to vector<8xf32>
    %18 = vector.shape_cast %17 : vector<8xf32> to vector<8x1xf32>
    %cst_12 = arith.constant 3.125000e-02 : f32
    %19 = vector.broadcast %cst_12 : f32 to vector<8x1xf32>
    %20 = arith.mulf %18, %19 : vector<8x1xf32>
    %cst_13 = arith.constant 9.99999974E-6 : f32
    %21 = vector.broadcast %cst_13 : f32 to vector<8x1xf32>
    %22 = arith.addf %20, %21 : vector<8x1xf32>
    %23 = math.rsqrt %22 : vector<8x1xf32>
    %24 = vector.broadcast %23 : vector<8x1xf32> to vector<8x32xf32>
    %25 = vector.broadcast %4 : vector<1x32xf32> to vector<8x32xf32>
    %26 = arith.mulf %24, %25 : vector<8x32xf32>
    %27 = arith.mulf %15, %26 : vector<8x32xf32>
    %28 = vector.broadcast %5 : vector<1x32xf32> to vector<8x32xf32>
    %29 = arith.addf %27, %28 : vector<8x32xf32>
    %c0_14 = arith.constant 0 : index
    %c0_15 = arith.constant 0 : index
    %30 = vector.load %arg5[%c0_14, %c0_15] : memref<8x32xf32, #tpu.memory_space<vmem>>, vector<8x32xf32>
    tpu.vector_store %arg5[%c0_14, %c0_15], %29 {strides = array<i32>} : memref<8x32xf32, #tpu.memory_space<vmem>>, vector<8x32xf32>,
    return
  }
  func.func @transform_0(%arg0: i32) -> (i32, i32) {
    %c0_i32 = arith.constant 0 : i32
    %c0_i32_0 = arith.constant 0 : i32
    return %arg0, %c0_i32 : i32, i32
  }
  func.func @transform_1(%arg0: i32) -> (i32, i32) {
    %c0_i32 = arith.constant 0 : i32
    %c0_i32_0 = arith.constant 0 : i32
    return %arg0, %c0_i32 : i32, i32
  }
  func.func @transform_2(%arg0: i32) -> (i32, i32) {
    %c0_i32 = arith.constant 0 : i32
    %c0_i32_0 = arith.constant 0 : i32
    %c0_i32_1 = arith.constant 0 : i32
    return %c0_i32, %c0_i32_0 : i32, i32
  }
  func.func @transform_3(%arg0: i32) -> (i32, i32) {
    %c0_i32 = arith.constant 0 : i32
    %c0_i32_0 = arith.constant 0 : i32
    %c0_i32_1 = arith.constant 0 : i32
    return %c0_i32, %c0_i32_0 : i32, i32
  }
  func.func @transform_4(%arg0: i32) -> (i32, i32) {
    %c0_i32 = arith.constant 0 : i32
    %c0_i32_0 = arith.constant 0 : i32
    return %arg0, %c0_i32 : i32, i32
  }
}

</mosaic_0001>

<llo_original>
// kernel: tpu_custom_call.1
$region0: #{tpu_custom_call.1}
  #allocation0 [shape = 'u32[]', space=smem, size = 0x4, offset = 0x4, fixed_abs, tag = 'smem constant byte address 0x4 - core index']
  #allocation1 [shape = 'u32[144,128]{1,0:T(1,128)}', space=vmem, size = 0x12000, scoped, tag = 'internal scratch']
  %s0 = inlined_call_operand.hbm [shape: f32[16,32], index: 0, kind: input, shape index: {}]
  %s1 = inlined_call_operand.hbm [shape: f32[16,32], index: 1, kind: input, shape index: {}]
  %s2 = inlined_call_operand.hbm [shape: f32[32,32], index: 2, kind: input, shape index: {}]
  %s3 = inlined_call_operand.hbm [shape: f32[3,32], index: 3, kind: input, shape index: {}]
  %s4 = inlined_call_operand.hbm [shape: f32[16,32], index: 4, kind: output, shape index: {}]
  %s5 = sld [smem:[#allocation0]]
  $region65: #{tpu_custom_call.1} parent=0
    _
  %s7 = ssub.s32 1, %s5
  %s8 = scalar_select 0, %s7, %s5
  $region1: #{tpu_custom_call.1} parent=0
    #allocation2 [shape = 'u8[8192]{0}', space=vmem, size = 0x2000, scoped, tag = 'input window, operand 0']
    #allocation3 [shape = 's32[2]{0}', space=sflag, size = 0x8, scoped, tag = 'scoped memory for tpu_custom_call.1']
    #allocation4 [shape = 's32[2]{0}', space=sflag, size = 0x8, scoped, tag = 'scoped memory for tpu_custom_call.1']
    #allocation5 [shape = 'u8[8192]{0}', space=vmem, size = 0x2000, scoped, tag = 'input window, operand 1']
    #allocation6 [shape = 's32[2]{0}', space=sflag, size = 0x8, scoped, tag = 'scoped memory for tpu_custom_call.1']
    #allocation7 [shape = 'u8[16384]{0}', space=vmem, size = 0x4000, scoped, tag = 'input window, operand 2, single buffered']
    #allocation8 [shape = 'u8[2048]{0}', space=vmem, size = 0x800, scoped, tag = 'input window, operand 3, single buffered']
    #allocation9 [shape = 's32[1]{0}', space=sflag, size = 0x4, scoped, tag = 'scoped memory for tpu_custom_call.1']
    #allocation10 [shape = 'u8[8192]{0}', space=vmem, size = 0x2000, scoped, tag = 'output window, operand 0']
    %9 = vsyncpa [#allocation3], 0
    %s10 = scalar_lea.sflag [#allocation3], 1
    %11 = vsyncpa %s10, 0
    %12 = vsyncpa [#allocation6], 0
    %s13 = scalar_lea.sflag [#allocation6], 1
    %14 = vsyncpa %s13, 0
    %15 = vsyncpa [#allocation9], 0
    %16 = vsyncpa [#allocation4], 0
    %s17 = scalar_lea.sflag [#allocation4], 1
    %18 = vsyncpa %s17, 0
    loop: start=0, step=1, limit=4
    $region2: #{tpu_custom_call.1} parent=1 // loop_pre_header
      _
    $region3: #{tpu_custom_call.1} parent=1 // loop_header
      %s20 = sphi 0, %s24
      %p21 = scmp.ge.s32.totalorder %s20, 4
      %s30 = sphi 0, %s32
      %s33 = sphi 0, %s30
      %s34 = sphi 0, %s33
      %s50 = sphi 0, %s34
      %s56 = sphi 0, %s58
      %s59 = sphi 0, %s56
      %s60 = sphi 0, %s59
      %s76 = sphi 0, %s60
      %s80 = sphi 0, %s80
      %s82 = sphi 0, %s80
      %s83 = sphi 0, %s82
      %s97 = sphi 0, %s83
      %s101 = sphi 0, %s101
      %s103 = sphi 0, %s101
      %s104 = sphi 0, %s103
      %s118 = sphi 0, %s104
      %s124 = sphi 0, %s126
      %s127 = sphi 0, %s124
      %s128 = sphi 0, %s127
      %s144 = sphi 0, %s128
    $region4: #{tpu_custom_call.1} parent=1 // loop_header_branch
      %23 = sbr.rel (%p21) target = $region8
    $region5: #{tpu_custom_call.1} parent=1 // loop_body
      %s25 = ssub.s32 %s20, 1
      %s26 = ssub.s32 %s20, 2
      %s27 = sadd.s32 %s20, 1
      %s28 = ssub.s32 %s20, %s27
      %p29 = scmp.eq.s32.totalorder %s28, 0
      %s31 = sadd.s32 %s30, 1
      %s32 = scalar_select %p29, %s30, %s31
      %p35 = pneg %p29
      %p36 = scmp.eq.s32.totalorder %s20, 1
      %p37 = por %p35, %p36
      %p38 = scmp.ne.s32.totalorder %s30, %s33
      %p39 = scmp.eq.s32.totalorder %s20, 0
      %p40 = por %p38, %p39
      %p41 = scmp.ne.s32.totalorder %s30, %s33
      %p42 = scmp.eq.s32.totalorder %s25, 1
      %p43 = por %p41, %p42
      %p44 = scmp.ne.s32.totalorder %s33, %s34
      %p45 = scmp.eq.s32.totalorder %s25, 0
      %p46 = por %p44, %p45
      %p47 = scmp.ne.s32.totalorder %s33, %s34
      %p48 = scmp.eq.s32.totalorder %s26, 1
      %p49 = por %p47, %p48
      %p51 = scmp.ne.s32.totalorder %s34, %s50
      %p52 = scmp.eq.s32.totalorder %s26, 0
      %p53 = por %p51, %p52
      %s54 = ssub.s32 %s20, %s27
      %p55 = scmp.eq.s32.totalorder %s54, 0
      %s57 = sadd.s32 %s56, 1
      %s58 = scalar_select %p55, %s56, %s57
      %p61 = pneg %p55
      %p62 = scmp.eq.s32.totalorder %s20, 1
      %p63 = por %p61, %p62
      %p64 = scmp.ne.s32.totalorder %s56, %s59
      %p65 = scmp.eq.s32.totalorder %s20, 0
      %p66 = por %p64, %p65
      %p67 = scmp.ne.s32.totalorder %s56, %s59
      %p68 = scmp.eq.s32.totalorder %s25, 1
      %p69 = por %p67, %p68
      %p70 = scmp.ne.s32.totalorder %s59, %s60
      %p71 = scmp.eq.s32.totalorder %s25, 0
      %p72 = por %p70, %p71
      %p73 = scmp.ne.s32.totalorder %s59, %s60
      %p74 = scmp.eq.s32.totalorder %s26, 1
      %p75 = por %p73, %p74
      %p77 = scmp.ne.s32.totalorder %s60, %s76
      %p78 = scmp.eq.s32.totalorder %s26, 0
      %p79 = por %p77, %p78
      %s81 = sadd.s32 %s80, 1
      %p84 = scmp.eq.s32.totalorder %s20, 1
      %p85 = scmp.ne.s32.totalorder %s80, %s82
      %p86 = scmp.eq.s32.totalorder %s20, 0
      %p87 = por %p85, %p86
      %p88 = scmp.ne.s32.totalorder %s80, %s82
      %p89 = scmp.eq.s32.totalorder %s25, 1
      %p90 = por %p88, %p89
      %p91 = scmp.ne.s32.totalorder %s82, %s83
      %p92 = scmp.eq.s32.totalorder %s25, 0
      %p93 = por %p91, %p92
      %p94 = scmp.ne.s32.totalorder %s82, %s83
      %p95 = scmp.eq.s32.totalorder %s26, 1
      %p96 = por %p94, %p95
      %p98 = scmp.ne.s32.totalorder %s83, %s97
      %p99 = scmp.eq.s32.totalorder %s26, 0
      %p100 = por %p98, %p99
      %s102 = sadd.s32 %s101, 1
      %p105 = scmp.eq.s32.totalorder %s20, 1
      %p106 = scmp.ne.s32.totalorder %s101, %s103
      %p107 = scmp.eq.s32.totalorder %s20, 0
      %p108 = por %p106, %p107
      %p109 = scmp.ne.s32.totalorder %s101, %s103
      %p110 = scmp.eq.s32.totalorder %s25, 1
      %p111 = por %p109, %p110
      %p112 = scmp.ne.s32.totalorder %s103, %s104
      %p113 = scmp.eq.s32.totalorder %s25, 0
      %p114 = por %p112, %p113
      %p115 = scmp.ne.s32.totalorder %s103, %s104
      %p116 = scmp.eq.s32.totalorder %s26, 1
      %p117 = por %p115, %p116
      %p119 = scmp.ne.s32.totalorder %s104, %s118
      %p120 = scmp.eq.s32.totalorder %s26, 0
      %p121 = por %p119, %p120
      %s122 = ssub.s32 %s20, %s27
      %p123 = scmp.eq.s32.totalorder %s122, 0
      %s125 = sadd.s32 %s124, 1
      %s126 = scalar_select %p123, %s124, %s125
      %p129 = pneg %p123
      %p130 = scmp.eq.s32.totalorder %s20, 1
      %p131 = por %p129, %p130
      %p132 = scmp.ne.s32.totalorder %s124, %s127
      %p133 = scmp.eq.s32.totalorder %s20, 0
      %p134 = por %p132, %p133
      %p135 = scmp.ne.s32.totalorder %s124, %s127
      %p136 = scmp.eq.s32.totalorder %s25, 1
      %p137 = por %p135, %p136
      %p138 = scmp.ne.s32.totalorder %s127, %s128
      %p139 = scmp.eq.s32.totalorder %s25, 0
      %p140 = por %p138, %p139
      %p141 = scmp.ne.s32.totalorder %s127, %s128
      %p142 = scmp.eq.s32.totalorder %s26, 1
      %p143 = por %p141, %p142
      %p145 = scmp.ne.s32.totalorder %s128, %s144
      %p146 = scmp.eq.s32.totalorder %s26, 0
      %p147 = por %p145, %p146
      %p148 = scmp.le.s32.totalorder 1, %s20
      %p149 = scmp.lt.s32.totalorder %s20, 3
      %p150 = pnand %p148, %p149
      %p151 = pneg %p150
      // Predicated region
      $region9: #{tpu_custom_call.1} parent=5 // pred_check
        _
      $region10: #{tpu_custom_call.1} parent=5 // pred_check_branch
        %153 = sbr.rel (%p150) target = $region12
      $region11: #{tpu_custom_call.1} parent=5 // pred_region
        %s154 = ssub.s32 %s20, 1
        // Predicated region
        $region13: #{tpu_custom_call.1} parent=11 // pred_check
          %p155 = pneg %p93
        $region14: #{tpu_custom_call.1} parent=11 // pred_check_branch
          %157 = sbr.rel (%p155) target = $region16
        $region15: #{tpu_custom_call.1} parent=11 // pred_region
          %s159 = ssub.s32 512, 512
          %160 = vsyncadd [#allocation6], %s159
          %s161 = sshll.u32 [#allocation7], 4
          %s162 = int_to_ptr.vmem [resolvable:$true] %s161
          %167 = dma.hbm_to_vmem [thread:$0]  %s2, 512, %s162, [#allocation6], 128, 128, 8
        $region16: #{tpu_custom_call.1} parent=11 // pred_fallthru
          _
        // Predicated region
        $region17: #{tpu_custom_call.1} parent=11 // pred_check
          %p168 = pneg %p114
        $region18: #{tpu_custom_call.1} parent=11 // pred_check_branch
          %170 = sbr.rel (%p168) target = $region20
        $region19: #{tpu_custom_call.1} parent=11 // pred_region
          %s172 = ssub.s32 64, 64
          %173 = vsyncadd [#allocation9], %s172
          %s175 = sshll.u32 [#allocation8], 4
          %s176 = int_to_ptr.vmem [resolvable:$true] %s175
          %178 = dma.hbm_to_vmem [thread:$0]  %s3, 64, %s176, [#allocation9]
        $region20: #{tpu_custom_call.1} parent=11 // pred_fallthru
          _
      $region12: #{tpu_custom_call.1} parent=5 // pred_fallthru
        _
      %p179 = scmp.lt.s32.totalorder %s20, 2
      // Predicated region
      $region21: #{tpu_custom_call.1} parent=5 // pred_check
        %p180 = pneg %p179
      $region22: #{tpu_custom_call.1} parent=5 // pred_check_branch
        %182 = sbr.rel (%p180) target = $region24
      $region23: #{tpu_custom_call.1} parent=5 // pred_region
        // Predicated region
        $region25: #{tpu_custom_call.1} parent=23 // pred_check
          %p183 = pneg %p40
        $region26: #{tpu_custom_call.1} parent=23 // pred_check_branch
          %185 = sbr.rel (%p183) target = $region28
        $region27: #{tpu_custom_call.1} parent=23 // pred_region
          %s186 = sand.u32 %s30, 1
          %s187 = scalar_lea.sflag [#allocation3], %s186
          %s188 = sand.u32 %s30, 1
          %s189 = smul.addr %s188, 8
          %s190 = scalar_lea.vmem [#allocation2], %s189
          %s192 = ssub.s32 128, 128
          %193 = vsyncadd %s187, %s192
          %s194 = smul.addr %s20, 128
          %s195 = scalar_lea.hbm %s0, %s194
          %s197 = sshll.u32 %s190, 4
          %s198 = int_to_ptr.vmem [resolvable:$true] %s197
          %200 = dma.hbm_to_vmem [thread:$0]  %s195, 128, %s198, %s187
        $region28: #{tpu_custom_call.1} parent=23 // pred_fallthru
          _
        // Predicated region
        $region29: #{tpu_custom_call.1} parent=23 // pred_check
          %p201 = pneg %p66
        $region30: #{tpu_custom_call.1} parent=23 // pred_check_branch
          %203 = sbr.rel (%p201) target = $region32
        $region31: #{tpu_custom_call.1} parent=23 // pred_region
          %s204 = sand.u32 %s20, 1
          %s205 = scalar_lea.sflag [#allocation6], %s204
          %s206 = sand.u32 %s56, 1
          %s207 = smul.addr %s206, 8
          %s208 = scalar_lea.vmem [#allocation5], %s207
          %s210 = ssub.s32 128, 128
          %211 = vsyncadd %s205, %s210
          %s212 = smul.addr %s20, 128
          %s213 = scalar_lea.hbm %s1, %s212
          %s215 = sshll.u32 %s208, 4
          %s216 = int_to_ptr.vmem [resolvable:$true] %s215
          %218 = dma.hbm_to_vmem [thread:$0]  %s213, 128, %s216, %s205
        $region32: #{tpu_custom_call.1} parent=23 // pred_fallthru
          _
      $region24: #{tpu_custom_call.1} parent=5 // pred_fallthru
        _
      %p219 = scmp.le.s32.totalorder 1, %s20
      %p220 = scmp.lt.s32.totalorder %s20, 3
      %p221 = pnand %p219, %p220
      %p222 = pneg %p221
      // Predicated region
      $region33: #{tpu_custom_call.1} parent=5 // pred_check
        _
      $region34: #{tpu_custom_call.1} parent=5 // pred_check_branch
        %224 = sbr.rel (%p221) target = $region36
      $region35: #{tpu_custom_call.1} parent=5 // pred_region
        %s225 = ssub.s32 %s20, 1
        %s226 = sand.u32 %s33, 1
        %s227 = scalar_lea.sflag [#allocation3], %s226
        %s228 = sand.u32 %s33, 1
        %s229 = smul.addr %s228, 8
        %s230 = scalar_lea.vmem [#allocation2], %s229
        // Predicated region
        $region37: #{tpu_custom_call.1} parent=35 // pred_check
          %p231 = pneg %p46
        $region38: #{tpu_custom_call.1} parent=35 // pred_check_branch
          %233 = sbr.rel (%p231) target = $region40
        $region39: #{tpu_custom_call.1} parent=35 // pred_region
          %234 = dma.done %s227, 128
        $region40: #{tpu_custom_call.1} parent=35 // pred_fallthru
          _
        %s235 = sand.u32 %s25, 1
        %s236 = scalar_lea.sflag [#allocation6], %s235
        %s237 = sand.u32 %s59, 1
        %s238 = smul.addr %s237, 8
        %s239 = scalar_lea.vmem [#allocation5], %s238
        // Predicated region
        $region41: #{tpu_custom_call.1} parent=35 // pred_check
          %p240 = pneg %p72
        $region42: #{tpu_custom_call.1} parent=35 // pred_check_branch
          %242 = sbr.rel (%p240) target = $region44
        $region43: #{tpu_custom_call.1} parent=35 // pred_region
          %243 = dma.done %s236, 128
        $region44: #{tpu_custom_call.1} parent=35 // pred_fallthru
          _
        // Predicated region
        $region45: #{tpu_custom_call.1} parent=35 // pred_check
          %p244 = pneg %p93
        $region46: #{tpu_custom_call.1} parent=35 // pred_check_branch
          %246 = sbr.rel (%p244) target = $region48
        $region47: #{tpu_custom_call.1} parent=35 // pred_region
          %247 = dma.done [#allocation6], 512
        $region48: #{tpu_custom_call.1} parent=35 // pred_fallthru
          _
        // Predicated region
        $region49: #{tpu_custom_call.1} parent=35 // pred_check
          %p248 = pneg %p114
        $region50: #{tpu_custom_call.1} parent=35 // pred_check_branch
          %250 = sbr.rel (%p248) target = $region52
        $region51: #{tpu_custom_call.1} parent=35 // pred_region
          %251 = dma.done [#allocation9], 64
        $region52: #{tpu_custom_call.1} parent=35 // pred_fallthru
          _
        %s252 = sand.u32 %s33, 1
        %s253 = scalar_lea.sflag [#allocation3], %s252
        %s254 = sand.u32 %s33, 1
        %s255 = smul.addr %s254, 8
        %s256 = scalar_lea.vmem [#allocation2], %s255
        %p257 = pneg %p46
        %p258 = pneg %p43
        %s259 = sand.u32 %s25, 1
        %s260 = scalar_lea.sflag [#allocation6], %s259
        %s261 = sand.u32 %s59, 1
        %s262 = smul.addr %s261, 8
        %s263 = scalar_lea.vmem [#allocation5], %s262
        %p264 = pneg %p72
        %p265 = pneg %p69
        %p266 = pneg %p93
        %p267 = pneg %p90
        %p268 = pneg %p114
        %p269 = pneg %p111
        %p270 = pneg %p140
        %p271 = pneg %p137
        %s272 = sand.u32 %s127, 1
        %s273 = scalar_lea.sflag [#allocation4], %s272
        %s274 = sand.u32 %s127, 1
        %s275 = smul.addr %s274, 8
        %s276 = scalar_lea.vmem [#allocation10], %s275
        %v277 = vld [vmem:[%s230] sm:$0xff]
        %v278 = vld [vmem:[#allocation7] sm:$0xff]
        %v279 = vld [vmem:[#allocation7 + $0x8] sm:$0xff]
        %v280 = vld [vmem:[#allocation7 + $0x10] sm:$0xff]
        %v281 = vld [vmem:[#allocation7 + $0x18] sm:$0xff]
        %v282 = vld [vmem:[#allocation8] sm:$0x1]
        %v283 = vld [vmem:[#allocation8 + $0x1] sm:$0x1]
        %v284 = vld [vmem:[#allocation8 + $0x2] sm:$0x1]
        %v285 = vlaneseq
        %v286 = vshrl.u32 %v285, 7
        %v287 = vsub.s32 0, %v286
        %v288 = vrot.slane %v282, %v287
        %vm289 = vcmask 261120
        %v291 = vsel %vm289, %v277, 0
        %293 = vmatprep.subr.mxu0 0.0
        %294 = vmatpush1.msra.mxu0 %v278
        %295 = vmatprep.subr.mxu0 0.0
        %296 = vmatpush1.msra.mxu0 %v279
        %297 = vmatprep.subr.mxu0 0.0
        %298 = vmatpush1.msra.mxu0 %v280
        %299 = vmatprep.subr.mxu0 0.0
        %300 = vmatpush1.msra.mxu0 %v281
        %301 = vmatprep.subr.mxu0 0.0
        %302 = vmatpush1.msra.mxu0 0.0
        %303 = vmatprep.subr.mxu0 0.0
        %304 = vmatpush1.msra.mxu0 0.0
        %305 = vmatprep.subr.mxu0 0.0
        %306 = vmatpush1.msra.mxu0 0.0
        %307 = vmatprep.subr.mxu0 0.0
        %308 = vmatpush1.msra.mxu0 0.0
        %309 = vmatprep.subr.mxu0 0.0
        %310 = vmatpush1.msra.mxu0 0.0
        %311 = vmatprep.subr.mxu0 0.0
        %312 = vmatpush1.msra.mxu0 0.0
        %313 = vmatprep.subr.mxu0 0.0
        %314 = vmatpush1.msra.mxu0 0.0
        %315 = vmatprep.subr.mxu0 0.0
        %316 = vmatpush1.msra.mxu0 0.0
        %317 = vmatprep.subr.mxu0 0.0
        %318 = vmatpush1.msra.mxu0 0.0
        %319 = vmatprep.subr.mxu0 0.0
        %320 = vmatpush1.msra.mxu0 0.0
        %321 = vmatprep.subr.mxu0 0.0
        %322 = vmatpush1.msra.mxu0 0.0
        %323 = vmatprep.subr.mxu0 0.0
        %324 = vmatpush1.msra.mxu0 0.0
        %325 = vmatprep.subr.mxu0 0.0
        %326 = vmatpush1.msra.mxu0 0.0
        %327 = vmatprep.subr.mxu0 0.0
        %328 = vmatpush1.msra.mxu0 0.0
        %329 = vmatprep.subr.mxu0 0.0
        %330 = vmatpush1.msra.mxu0 0.0
        %331 = vmatprep.subr.mxu0 0.0
        %332 = vmatpush1.msra.mxu0 0.0
        %333 = vmatprep.subr.mxu0 0.0
        %334 = vmatpush1.msra.mxu0 0.0
        %335 = vmatprep.subr.mxu0 0.0
        %336 = vmatpush1.msra.mxu0 0.0
        %337 = vmatprep.subr.mxu0 0.0
        %338 = vmatpush1.msra.mxu0 0.0
        %339 = vmatprep.subr.mxu0 0.0
        %340 = vmatpush1.msra.mxu0 0.0
        %341 = vmatprep.subr.mxu0 0.0
        %342 = vmatpush1.msra.mxu0 0.0
        %343 = vmatprep.subr.mxu0 0.0
        %344 = vmatpush1.msra.mxu0 0.0
        %345 = vmatprep.subr.mxu0 0.0
        %346 = vmatpush1.msra.mxu0 0.0
        %347 = vmatprep.subr.mxu0 0.0
        %348 = vmatpush1.msra.mxu0 0.0
        %349 = vmatprep.subr.mxu0 0.0
        %350 = vmatpush1.msra.mxu0 0.0
        %351 = vmatprep.subr.mxu0 0.0
        %352 = vmatpush1.msra.mxu0 0.0
        %353 = vmatprep.subr.mxu0 0.0
        %354 = vmatpush1.msra.mxu0 0.0
        %355 = vmatprep.subr.mxu0 0.0
        %356 = vmatpush1.msra.mxu0 0.0
        %357 = vmatprep.mubr.f32.mxu0 0.0
        %358 = vmatmul.mubr.f32.gmra.mrb[0].mxu0 %v291
        %v359 = vpop.f32.mrb[0].mxu0
        %v360 = vadd.f32 %v288, %v359
        %v361 = vpop.f32.mrb[0].mxu0
        %362 = vdwg.mxu0
        %v363 = vld [vmem:[%s239] sm:$0xff]
        %v364 = vadd.f32 %v360, %v363
        %v365 = vsel %vm289, %v364, 0.0
        %366 = vadd.xlane.f32.xlu0 %v365
        %v367 = vpop.xlane.xlu0 %366
        %v368 = vmul.f32 %v367, 0.03125
        %v369 = vsub.f32 %v364, %v368
        %v370 = vmul.f32 %v369, %v369
        %v371 = vsel %vm289, %v370, 0.0
        %372 = vadd.xlane.f32.xlu0 %v371
        %v373 = vpop.xlane.xlu0 %372
        %v374 = vmul.f32 %v373, 0.03125
        %v375 = vadd.f32 %v374, 1e-05
        %v376 = vrsqrt.pop %v375
        %v377 = vlaneseq
        %v378 = vshrl.u32 %v377, 7
        %v379 = vsub.s32 0, %v378
        %v380 = vrot.slane %v283, %v379
        %v381 = vmul.f32 %v376, %v380
        %v382 = vmul.f32 %v369, %v381
        %v383 = vlaneseq
        %v384 = vshrl.u32 %v383, 7
        %v385 = vsub.s32 0, %v384
        %v386 = vrot.slane %v284, %v385
        %v387 = vadd.f32 %v382, %v386
        %388 = vst.msk [vmem:[%s276] sm:$0xff] %vm289, %v387
        %s389 = sand.u32 %s127, 1
        %s390 = scalar_lea.sflag [#allocation4], %s389
        %s391 = sand.u32 %s127, 1
        %s392 = smul.addr %s391, 8
        %s393 = scalar_lea.vmem [#allocation10], %s392
        // Predicated region
        $region53: #{tpu_custom_call.1} parent=35 // pred_check
          %p394 = pneg %p137
        $region54: #{tpu_custom_call.1} parent=35 // pred_check_branch
          %396 = sbr.rel (%p394) target = $region56
        $region55: #{tpu_custom_call.1} parent=35 // pred_region
          %s398 = ssub.s32 128, 128
          %399 = vsyncadd %s390, %s398
          %s400 = smul.addr %s25, 128
          %s401 = scalar_lea.hbm %s4, %s400
          %s403 = sshll.u32 %s393, 4
          %s404 = int_to_ptr.vmem [resolvable:$true] %s403
          %406 = dma.vmem_to_hbm [thread:$0]  %s404, 128, %s401, %s390
        $region56: #{tpu_custom_call.1} parent=35 // pred_fallthru
          _
      $region36: #{tpu_custom_call.1} parent=5 // pred_fallthru
        _
      %p407 = scmp.le.s32.totalorder 2, %s20
      // Predicated region
      $region57: #{tpu_custom_call.1} parent=5 // pred_check
        %p408 = pneg %p407
      $region58: #{tpu_custom_call.1} parent=5 // pred_check_branch
        %410 = sbr.rel (%p408) target = $region60
      $region59: #{tpu_custom_call.1} parent=5 // pred_region
        %s411 = ssub.s32 %s20, 2
        // Predicated region
        $region61: #{tpu_custom_call.1} parent=59 // pred_check
          %p412 = pneg %p143
        $region62: #{tpu_custom_call.1} parent=59 // pred_check_branch
          %414 = sbr.rel (%p412) target = $region64
        $region63: #{tpu_custom_call.1} parent=59 // pred_region
          %s415 = sand.u32 %s128, 1
          %s416 = scalar_lea.sflag [#allocation4], %s415
          %s417 = sand.u32 %s128, 1
          %s418 = smul.addr %s417, 8
          %s419 = scalar_lea.vmem [#allocation10], %s418
          %420 = dma.done %s416, 128
        $region64: #{tpu_custom_call.1} parent=59 // pred_fallthru
          _
      $region60: #{tpu_custom_call.1} parent=5 // pred_fallthru
        _
    $region6: #{tpu_custom_call.1} parent=1 // loop_footer
      %s24 = sadd.s32 1, %s20
    $region7: #{tpu_custom_call.1} parent=1 // loop_footer_branch
      %19 = sbr.rel target = $region3
    $region8: #{tpu_custom_call.1} parent=1 // loop_exit
      _
    %421 = vsyncpa [#allocation3], 1
    %s422 = scalar_lea.sflag [#allocation3], 1
    %423 = vsyncpa %s422, 1
    %424 = vsyncpa [#allocation6], 1
    %s425 = scalar_lea.sflag [#allocation6], 1
    %426 = vsyncpa %s425, 1
    %427 = vsyncpa [#allocation9], 1
    %428 = vsyncpa [#allocation4], 1
    %s429 = scalar_lea.sflag [#allocation4], 1
    %430 = vsyncpa %s429, 1

</llo_original>
